<compile_context>
chip_gen: v6e
topology: v6e:2x2x1
jax: 0.10.0
libtpu: 0.0.40
codegen_flags: <defaults>
</compile_context>

<pallas_src>
import functools

import jax
import jax.numpy as jnp
from jax import lax
from jax.experimental import pallas as pl
from jax.experimental.pallas import tpu as pltpu


def _gelu_exact(x):
    # PyTorch F.gelu default = exact erf formulation.
    return x * 0.5 * (1.0 + lax.erf(x * (1.0 / jnp.sqrt(2.0).astype(x.dtype))))


def token_mixer_kernel(x_ref, w_ref, vec_ref, o_ref, *, eps, dims):
    B, S, D, H = dims
    BS, BH = B * S, B * H

    x = x_ref[...]                     # (BS, D) f32
    W = w_ref[...]                     # (2, BS, BH+1)
    V = vec_ref[...]                   # (3, Lv)

    gamma = V[0:1, :D]                 # (1, D)
    beta = V[1:2, :D]                  # (1, D)
    b1 = V[2:3, :BH]                   # (1, BH)   b1 tiled over batch

    w1b = W[0, :, :BH]                 # (BS, BH)  block-diag w1
    w2bt = W[1, :, :BH]                # (BS, BH)  block-diag w2, transposed
    b2c = W[1, :, BH:BH + 1]           # (BS, 1)   b2 tiled over batch, column

    # ---- LayerNorm over d_model (last / lane dim) ----
    mean = jnp.mean(x, axis=-1, keepdims=True)
    var = jnp.mean(jnp.square(x - mean), axis=-1, keepdims=True)
    xn = (x - mean) * lax.rsqrt(var + eps) * gamma + beta          # (BS, D)

    # ---- Token-mixing MLP over S, whole batch in one MXU push per layer ----
    # hT[d, b*H+h] = sum_s xn[b*S+s, d] * w1[s, h]   (transposed-lhs matmul)
    hT = lax.dot_general(xn, w1b, (((0,), (0,)), ((), ())),
                         preferred_element_type=jnp.float32)       # (D, BH)
    hT = _gelu_exact(hT + b1)
    # y[b*S+s, d] = sum_h w2[h, s] * hT[d, b*H+h]    (trans-b matmul)
    y = lax.dot_general(w2bt, hT, (((1,), (1,)), ((), ())),
                        preferred_element_type=jnp.float32)        # (BS, D)

    # Residual + fc2 bias, already in the output (BS, D) layout.
    o_ref[...] = y + b2c + x


def pack_token_mixer_params(gamma, beta, w1, b1, w2, b2, batch):
    """One-time parameter packing (block-diag batching + DMA-count reduction)."""
    S, H = w1.shape
    D = gamma.shape[0]
    B = batch
    BS, BH = B * S, B * H
    eye_b = jnp.eye(B, dtype=w1.dtype)
    w1b = jnp.kron(eye_b, w1)                                  # (BS, BH)
    w2bt = jnp.kron(eye_b, w2).T                               # (BS, BH)
    b2col = jnp.tile(b2, B).reshape(BS, 1)                     # (BS, 1)
    W = jnp.stack([
        jnp.concatenate([w1b, jnp.zeros((BS, 1), w1.dtype)], axis=1),
        jnp.concatenate([w2bt, b2col], axis=1),
    ])                                                         # (2, BS, BH+1)
    lv = max(D, BH)

    def pad(v):
        return jnp.pad(v, (0, lv - v.shape[0]))

    vec = jnp.stack([pad(gamma), pad(beta), pad(jnp.tile(b1, B))])  # (3, lv)
    return W, vec


def token_mixer(x, W, vec, *, seq_len, hidden, eps=1e-5):
    """x: (B, S, D) float32; W, vec from pack_token_mixer_params."""
    B, S, D = x.shape
    assert S == seq_len
    kernel = functools.partial(token_mixer_kernel, eps=eps,
                               dims=(B, S, D, hidden))
    x2 = x.reshape(B * S, D)  # free reshape (contiguous)
    out2 = pl.pallas_call(
        kernel,
        out_shape=jax.ShapeDtypeStruct((B * S, D), x.dtype),
        compiler_params=pltpu.CompilerParams(
            vmem_limit_bytes=32 * 1024 * 1024),
    )(x2, W, vec)
    return out2.reshape(B, S, D)


def token_mixer_ref(x, gamma, beta, w1, b1, w2, b2, *, eps=1e-5):
    mean = jnp.mean(x, axis=-1, keepdims=True)
    var = jnp.mean(jnp.square(x - mean), axis=-1, keepdims=True)
    xn = (x - mean) / jnp.sqrt(var + eps) * gamma + beta
    xt = jnp.swapaxes(xn, 1, 2)                 # (B, D, S)
    h = _gelu_exact(xt @ w1 + b1)               # (B, D, H)
    y = h @ w2 + b2                             # (B, D, S)
    return jnp.swapaxes(y, 1, 2) + x


if __name__ == "__main__":
    # Module config: d_model=32, seq_len=8, expansion_factor=2, dropout=0.0
    B, S, D = 2, 8, 32
    expansion = 2
    H = expansion * S

    key = jax.random.PRNGKey(0)
    kx, kg, kb, kw1, kb1, kw2, kb2 = jax.random.split(key, 7)

    x = jax.random.normal(kx, (B, S, D), dtype=jnp.float32)
    gamma = 1.0 + 0.1 * jax.random.normal(kg, (D,), dtype=jnp.float32)
    beta = 0.1 * jax.random.normal(kb, (D,), dtype=jnp.float32)
    # Linear weights stored as (in, out) so y = x @ W + b
    w1 = jax.random.normal(kw1, (S, H), dtype=jnp.float32) / jnp.sqrt(S)
    b1 = 0.1 * jax.random.normal(kb1, (H,), dtype=jnp.float32)
    w2 = jax.random.normal(kw2, (H, S), dtype=jnp.float32) / jnp.sqrt(H)
    b2 = 0.1 * jax.random.normal(kb2, (S,), dtype=jnp.float32)

    W_packed, vec_packed = pack_token_mixer_params(gamma, beta, w1, b1, w2,
                                                   b2, batch=B)

    out = token_mixer(x, W_packed, vec_packed, seq_len=S, hidden=H)
    out = jax.block_until_ready(out)

    ref = token_mixer_ref(x, gamma, beta, w1, b1, w2, b2)
    assert out.shape == (B, S, D)
    assert jnp.allclose(out, ref, atol=1e-4, rtol=1e-4), "mismatch vs reference"
    print("KERNEL_OK")
</pallas_src>

<mosaic_0001>
module attributes {stable_mosaic.version = 11 : i64} {
  func.func @token_mixer_kernel(%arg0: memref<16x32xf32, #tpu.memory_space<vmem>>, %arg1: memref<2x16x33xf32, #tpu.memory_space<vmem>>, %arg2: memref<3x32xf32, #tpu.memory_space<vmem>>, %arg3: memref<16x32xf32, #tpu.memory_space<vmem>>) attributes {dimension_semantics = [], scalar_prefetch = 0 : i64, scratch_operands = 0 : i64, tpu.core_type = #tpu.core_type<tc>} {
    %c0 = arith.constant 0 : index
    %c0_0 = arith.constant 0 : index
    %0 = vector.load %arg0[%c0, %c0_0] : memref<16x32xf32, #tpu.memory_space<vmem>>, vector<16x32xf32>
    %c0_1 = arith.constant 0 : index
    %c0_2 = arith.constant 0 : index
    %c0_3 = arith.constant 0 : index
    %1 = vector.load %arg1[%c0_1, %c0_2, %c0_3] : memref<2x16x33xf32, #tpu.memory_space<vmem>>, vector<2x16x33xf32>
    %c0_4 = arith.constant 0 : index
    %c0_5 = arith.constant 0 : index
    %2 = vector.load %arg2[%c0_4, %c0_5] : memref<3x32xf32, #tpu.memory_space<vmem>>, vector<3x32xf32>
    %3 = vector.extract_strided_slice %2 {offsets = [0, 0], sizes = [1, 32], strides = [1, 1]} : vector<3x32xf32> to vector<1x32xf32>
    %4 = vector.extract_strided_slice %2 {offsets = [1, 0], sizes = [1, 32], strides = [1, 1]} : vector<3x32xf32> to vector<1x32xf32>
    %5 = vector.extract_strided_slice %2 {offsets = [2, 0], sizes = [1, 32], strides = [1, 1]} : vector<3x32xf32> to vector<1x32xf32>
    %6 = vector.extract_strided_slice %1 {offsets = [0, 0, 0], sizes = [1, 16, 32], strides = [1, 1, 1]} : vector<2x16x33xf32> to vector<1x16x32xf32>
    %7 = vector.shape_cast %6 : vector<1x16x32xf32> to vector<16x32xf32>
    %8 = vector.extract_strided_slice %1 {offsets = [1, 0, 0], sizes = [1, 16, 32], strides = [1, 1, 1]} : vector<2x16x33xf32> to vector<1x16x32xf32>
    %9 = vector.shape_cast %8 : vector<1x16x32xf32> to vector<16x32xf32>
    %10 = vector.extract_strided_slice %1 {offsets = [1, 0, 32], sizes = [1, 16, 1], strides = [1, 1, 1]} : vector<2x16x33xf32> to vector<1x16x1xf32>
    %11 = vector.shape_cast %10 : vector<1x16x1xf32> to vector<16x1xf32>
    %cst = arith.constant dense<0.000000e+00> : vector<16xf32>
    %12 = vector.multi_reduction <add>, %0, %cst [1] : vector<16x32xf32> to vector<16xf32>
    %13 = vector.shape_cast %12 : vector<16xf32> to vector<16x1xf32>
    %cst_6 = arith.constant 3.200000e+01 : f32
    %14 = vector.broadcast %cst_6 : f32 to vector<16x1xf32>
    %15 = arith.divf %13, %14 : vector<16x1xf32>
    %16 = vector.broadcast %15 : vector<16x1xf32> to vector<16x32xf32>
    %17 = arith.subf %0, %16 : vector<16x32xf32>
    %18 = arith.mulf %17, %17 : vector<16x32xf32>
    %cst_7 = arith.constant dense<0.000000e+00> : vector<16xf32>
    %19 = vector.multi_reduction <add>, %18, %cst_7 [1] : vector<16x32xf32> to vector<16xf32>
    %20 = vector.shape_cast %19 : vector<16xf32> to vector<16x1xf32>
    %cst_8 = arith.constant 3.200000e+01 : f32
    %21 = vector.broadcast %cst_8 : f32 to vector<16x1xf32>
    %22 = arith.divf %20, %21 : vector<16x1xf32>
    %23 = vector.broadcast %15 : vector<16x1xf32> to vector<16x32xf32>
    %24 = arith.subf %0, %23 : vector<16x32xf32>
    %cst_9 = arith.constant 9.99999974E-6 : f32
    %25 = vector.broadcast %cst_9 : f32 to vector<16x1xf32>
    %26 = arith.addf %22, %25 : vector<16x1xf32>
    %27 = math.rsqrt %26 : vector<16x1xf32>
    %28 = vector.broadcast %27 : vector<16x1xf32> to vector<16x32xf32>
    %29 = arith.mulf %24, %28 : vector<16x32xf32>
    %30 = vector.broadcast %3 : vector<1x32xf32> to vector<16x32xf32>
    %31 = arith.mulf %29, %30 : vector<16x32xf32>
    %32 = vector.broadcast %4 : vector<1x32xf32> to vector<16x32xf32>
    %33 = arith.addf %31, %32 : vector<16x32xf32>
    %cst_10 = arith.constant dense<0.000000e+00> : vector<32x32xf32>
    %34 = tpu.matmul %33, %7, %cst_10 {dimension_numbers = #tpu.dot_dimension_numbers<[0], [0], [1], [1], [0, 1, 1, 1], [], []>} : vector<16x32xf32>, vector<16x32xf32>, vector<32x32xf32> -> vector<32x32xf32>
    %35 = vector.broadcast %5 : vector<1x32xf32> to vector<32x32xf32>
    %36 = arith.addf %34, %35 : vector<32x32xf32>
    %cst_11 = arith.constant 5.000000e-01 : f32
    %37 = vector.broadcast %cst_11 : f32 to vector<32x32xf32>
    %38 = arith.mulf %36, %37 : vector<32x32xf32>
    %cst_12 = arith.constant 2.000000e+00 : f32
    %39 = math.sqrt %cst_12 : f32
    %cst_13 = arith.constant 1.000000e+00 : f32
    %40 = arith.divf %cst_13, %39 : f32
    %41 = vector.broadcast %40 : f32 to vector<32x32xf32>
    %42 = arith.mulf %36, %41 : vector<32x32xf32>
    %43 = math.erf %42 : vector<32x32xf32>
    %cst_14 = arith.constant 1.000000e+00 : f32
    %44 = vector.broadcast %cst_14 : f32 to vector<32x32xf32>
    %45 = arith.addf %44, %43 : vector<32x32xf32>
    %46 = arith.mulf %38, %45 : vector<32x32xf32>
    %cst_15 = arith.constant dense<0.000000e+00> : vector<16x32xf32>
    %47 = tpu.matmul %9, %46, %cst_15 {dimension_numbers = #tpu.dot_dimension_numbers<[1], [1], [0], [0], [0, 0, 1, 0], [], []>} : vector<16x32xf32>, vector<32x32xf32>, vector<16x32xf32> -> vector<16x32xf32>
    %48 = vector.broadcast %11 : vector<16x1xf32> to vector<16x32xf32>
    %49 = arith.addf %47, %48 : vector<16x32xf32>
    %50 = arith.addf %49, %0 : vector<16x32xf32>
    %c0_16 = arith.constant 0 : index
    %c0_17 = arith.constant 0 : index
    %51 = vector.load %arg3[%c0_16, %c0_17] : memref<16x32xf32, #tpu.memory_space<vmem>>, vector<16x32xf32>
    tpu.vector_store %arg3[%c0_16, %c0_17], %50 {strides = array<i32>} : memref<16x32xf32, #tpu.memory_space<vmem>>, vector<16x32xf32>,
    return
  }
}

</mosaic_0001>

<llo_original>
// kernel: tpu_custom_call.1
$region0: #{tpu_custom_call.1}
  #allocation0 [shape = 'u32[]', space=smem, size = 0x4, offset = 0x4, fixed_abs, tag = 'smem constant byte address 0x4 - core index']
  #allocation1 [shape = 'u32[144,128]{1,0:T(1,128)}', space=vmem, size = 0x12000, scoped, tag = 'internal scratch']
  %s0 = inlined_call_operand.hbm [shape: f32[16,32], index: 0, kind: input, shape index: {}]
  %s1 = inlined_call_operand.hbm [shape: f32[2,16,33], index: 1, kind: input, shape index: {}]
  %s2 = inlined_call_operand.hbm [shape: f32[3,32], index: 2, kind: input, shape index: {}]
  %s3 = inlined_call_operand.hbm [shape: f32[16,32], index: 3, kind: output, shape index: {}]
  %s4 = sld [smem:[#allocation0]]
  $region34: #{tpu_custom_call.1} parent=0
    _
  %s6 = ssub.s32 1, %s4
  %s7 = scalar_select 0, %s6, %s4
  $region1: #{tpu_custom_call.1} parent=0
    #allocation2 [shape = 'u8[8192]{0}', space=vmem, size = 0x2000, scoped, tag = 'input window, operand 0, single buffered']
    #allocation3 [shape = 's32[1]{0}', space=sflag, size = 0x4, scoped, tag = 'scoped memory for tpu_custom_call.1']
    #allocation4 [shape = 's32[1]{0}', space=sflag, size = 0x4, scoped, tag = 'scoped memory for tpu_custom_call.1']
    #allocation5 [shape = 'u8[16384]{0}', space=vmem, size = 0x4000, scoped, tag = 'input window, operand 1, single buffered']
    #allocation6 [shape = 's32[1]{0}', space=sflag, size = 0x4, scoped, tag = 'scoped memory for tpu_custom_call.1']
    #allocation7 [shape = 'u8[2048]{0}', space=vmem, size = 0x800, scoped, tag = 'input window, operand 2, single buffered']
    #allocation8 [shape = 'u8[8192]{0}', space=vmem, size = 0x2000, scoped, tag = 'output window, operand 0, single buffered']
    %8 = vsyncpa [#allocation3], 0
    %9 = vsyncpa [#allocation6], 0
    %10 = vsyncpa [#allocation4], 0
    // Predicated region
    $region2: #{tpu_custom_call.1} parent=1 // pred_check
      _
    $region3: #{tpu_custom_call.1} parent=1 // pred_check_branch
      %12 = sbr.rel (0) target = $region5
    $region4: #{tpu_custom_call.1} parent=1 // pred_region
      %s14 = ssub.s32 256, 256
      %15 = vsyncadd [#allocation3], %s14
      %s16 = sshll.u32 [#allocation2], 4
      %s17 = int_to_ptr.vmem [resolvable:$true] %s16
      %22 = dma.hbm_to_vmem [thread:$0]  %s0, 256, %s17, [#allocation3], 128, 128, 8
    $region5: #{tpu_custom_call.1} parent=1 // pred_fallthru
      _
    // Predicated region
    $region6: #{tpu_custom_call.1} parent=1 // pred_check
      _
    $region7: #{tpu_custom_call.1} parent=1 // pred_check_branch
      %24 = sbr.rel (0) target = $region9
    $region8: #{tpu_custom_call.1} parent=1 // pred_region
      %s26 = ssub.s32 512, 512
      %27 = vsyncadd [#allocation6], %s26
      %s28 = sshll.u32 [#allocation5], 4
      %s29 = int_to_ptr.vmem [resolvable:$true] %s28
      %34 = dma.hbm_to_vmem [thread:$0]  %s1, 512, %s29, [#allocation6], 128, 128, 8
    $region9: #{tpu_custom_call.1} parent=1 // pred_fallthru
      _
    // Predicated region
    $region10: #{tpu_custom_call.1} parent=1 // pred_check
      _
    $region11: #{tpu_custom_call.1} parent=1 // pred_check_branch
      %36 = sbr.rel (0) target = $region13
    $region12: #{tpu_custom_call.1} parent=1 // pred_region
      %s38 = ssub.s32 64, 64
      %39 = vsyncadd [#allocation6], %s38
      %s41 = sshll.u32 [#allocation7], 4
      %s42 = int_to_ptr.vmem [resolvable:$true] %s41
      %44 = dma.hbm_to_vmem [thread:$0]  %s2, 64, %s42, [#allocation6]
    $region13: #{tpu_custom_call.1} parent=1 // pred_fallthru
      _
    // Predicated region
    $region14: #{tpu_custom_call.1} parent=1 // pred_check
      _
    $region15: #{tpu_custom_call.1} parent=1 // pred_check_branch
      %46 = sbr.rel (0) target = $region17
    $region16: #{tpu_custom_call.1} parent=1 // pred_region
      %47 = dma.done [#allocation3], 256
    $region17: #{tpu_custom_call.1} parent=1 // pred_fallthru
      _
    // Predicated region
    $region18: #{tpu_custom_call.1} parent=1 // pred_check
      _
    $region19: #{tpu_custom_call.1} parent=1 // pred_check_branch
      %49 = sbr.rel (0) target = $region21
    $region20: #{tpu_custom_call.1} parent=1 // pred_region
      %50 = dma.done [#allocation6], 512
    $region21: #{tpu_custom_call.1} parent=1 // pred_fallthru
      _
    // Predicated region
    $region22: #{tpu_custom_call.1} parent=1 // pred_check
      _
    $region23: #{tpu_custom_call.1} parent=1 // pred_check_branch
      %52 = sbr.rel (0) target = $region25
    $region24: #{tpu_custom_call.1} parent=1 // pred_region
      %53 = dma.done [#allocation6], 64
    $region25: #{tpu_custom_call.1} parent=1 // pred_fallthru
      _
    %v54 = vld [vmem:[#allocation2] sm:$0xff]
    %v55 = vld [vmem:[#allocation2 + $0x8] sm:$0xff]
    %v56 = vld [vmem:[#allocation5] sm:$0xff]
    %v57 = vld [vmem:[#allocation5 + $0x8] sm:$0xff]
    %v58 = vld [vmem:[#allocation5 + $0x10] sm:$0xff]
    %v59 = vld [vmem:[#allocation5 + $0x18] sm:$0xff]
    %v60 = vld [vmem:[#allocation7] sm:$0x7]
    %vm61 = vcmask 261120
    %v62 = vsel %vm61, %v54, 0.0
    %63 = vadd.xlane.f32.xlu0 %v62
    %v64 = vpop.xlane.xlu0 %63
    %v65 = vsel %vm61, %v55, 0.0
    %66 = vadd.xlane.f32.xlu0 %v65
    %v67 = vpop.xlane.xlu0 %66
    %v68 = vrcp.pop 32.0
    %v69 = vmul.f32 %v64, %v68
    %v70 = vmul.f32 %v67, %v68
    %v71 = vsub.f32 %v54, %v69
    %v72 = vsub.f32 %v55, %v70
    %v73 = vmul.f32 %v71, %v71
    %v74 = vmul.f32 %v72, %v72
    %v75 = vsel %vm61, %v73, 0.0
    %76 = vadd.xlane.f32.xlu0 %v75
    %v77 = vpop.xlane.xlu0 %76
    %v78 = vsel %vm61, %v74, 0.0
    %79 = vadd.xlane.f32.xlu0 %v78
    %v80 = vpop.xlane.xlu0 %79
    %v81 = vmul.f32 %v77, %v68
    %v82 = vmul.f32 %v80, %v68
    %v83 = vadd.f32 %v81, 1e-05
    %v84 = vadd.f32 %v82, 1e-05
    %v85 = vrsqrt.pop %v83
    %v86 = vrsqrt.pop %v84
    %v87 = vmul.f32 %v71, %v85
    %v88 = vmul.f32 %v72, %v86
    %v89 = vlaneseq
    %v90 = vshrl.u32 %v89, 7
    %v91 = vsub.s32 0, %v90
    %v92 = vrot.slane %v60, %v91
    %v93 = vmul.f32 %v87, %v92
    %v94 = vmul.f32 %v88, %v92
    %v95 = vlaneseq
    %v96 = vshrl.u32 %v95, 7
    %v97 = vsub.s32 1, %v96
    %v98 = vrot.slane %v60, %v97
    %v99 = vadd.f32 %v93, %v98
    %v100 = vadd.f32 %v94, %v98
    %v101 = vlaneseq
    %v102 = vshrl.u32 %v101, 7
    %v103 = vsub.s32 2, %v102
    %v104 = vrot.slane %v60, %v103
    %105 = vxpose.xlu0.b32.start [1/16] %v99, 128
    %106 = vxpose.xlu0.b32.cont [2/16] %v100, 128
    %107 = vxpose.xlu0.b32.cont [3/16] 0.0, 128
    %108 = vxpose.xlu0.b32.cont [4/16] 0.0, 128
    %109 = vxpose.xlu0.b32.cont [5/16] 0.0, 128
    %110 = vxpose.xlu0.b32.cont [6/16] 0.0, 128
    %111 = vxpose.xlu0.b32.cont [7/16] 0.0, 128
    %112 = vxpose.xlu0.b32.cont [8/16] 0.0, 128
    %113 = vxpose.xlu0.b32.cont [9/16] 0.0, 128
    %114 = vxpose.xlu0.b32.cont [10/16] 0.0, 128
    %115 = vxpose.xlu0.b32.cont [11/16] 0.0, 128
    %116 = vxpose.xlu0.b32.cont [12/16] 0.0, 128
    %117 = vxpose.xlu0.b32.cont [13/16] 0.0, 128
    %118 = vxpose.xlu0.b32.cont [14/16] 0.0, 128
    %119 = vxpose.xlu0.b32.cont [15/16] 0.0, 128
    %120 = vxpose.xlu0.b32.end [16/16] 0.0, 128
    %v121 = vpop.trf.xlu0
    %v122 = vpop.trf.xlu0
    %v123 = vpop.trf.xlu0
    %v124 = vpop.trf.xlu0
    %v125 = vpop.trf.xlu0
    %v126 = vpop.trf.xlu0
    %v127 = vpop.trf.xlu0
    %v128 = vpop.trf.xlu0
    %v129 = vpop.trf.xlu0
    %v130 = vpop.trf.xlu0
    %v131 = vpop.trf.xlu0
    %v132 = vpop.trf.xlu0
    %v133 = vpop.trf.xlu0
    %v134 = vpop.trf.xlu0
    %v135 = vpop.trf.xlu0
    %v136 = vpop.trf.xlu0
    %vm137 = vcmask 130048
    %v139 = vsel %vm137, %v121, 0
    %v142 = vsel %vm137, %v122, 0
    %v145 = vsel %vm137, %v123, 0
    %v148 = vsel %vm137, %v124, 0
    %150 = vmatprep.subr.mxu0 0.0
    %151 = vmatpush1.msra.mxu0 0.0
    %152 = vmatprep.subr.mxu0 0.0
    %153 = vmatpush1.msra.mxu0 0.0
    %154 = vmatprep.subr.mxu0 0.0
    %155 = vmatpush1.msra.mxu0 0.0
    %156 = vmatprep.subr.mxu0 0.0
    %157 = vmatpush1.msra.mxu0 0.0
    %158 = vmatprep.subr.mxu0 0.0
    %159 = vmatpush1.msra.mxu0 0.0
    %160 = vmatprep.subr.mxu0 0.0
    %161 = vmatpush1.msra.mxu0 0.0
    %162 = vmatprep.subr.mxu0 0.0
    %163 = vmatpush1.msra.mxu0 0.0
    %164 = vmatprep.subr.mxu0 0.0
    %165 = vmatpush1.msra.mxu0 0.0
    %166 = vmatprep.subr.mxu0 0.0
    %167 = vmatpush1.msra.mxu0 0.0
    %168 = vmatprep.subr.mxu0 0.0
    %169 = vmatpush1.msra.mxu0 0.0
    %170 = vmatprep.subr.mxu0 0.0
    %171 = vmatpush1.msra.mxu0 0.0
    %172 = vmatprep.subr.mxu0 0.0
    %173 = vmatpush1.msra.mxu0 0.0
    %174 = vmatprep.subr.mxu0 0.0
    %175 = vmatpush1.msra.mxu0 0.0
    %176 = vmatprep.subr.mxu0 0.0
    %177 = vmatpush1.msra.mxu0 0.0
    %178 = vmatprep.subr.mxu0 0.0
    %179 = vmatpush1.msra.mxu0 %v57
    %180 = vmatprep.subr.mxu0 0.0
    %181 = vmatpush1.msra.mxu0 %v56
    %182 = vmatprep.subr.mxu0 0.0
    %183 = vmatpush2.msra.mxu0 0.0
    %184 = vmatprep.subr.mxu0 0.0
    %185 = vmatpush2.msra.mxu0 0.0
    %186 = vmatprep.subr.mxu0 0.0
    %187 = vmatpush2.msra.mxu0 0.0
    %188 = vmatprep.subr.mxu0 0.0
    %189 = vmatpush2.msra.mxu0 0.0
    %190 = vmatprep.subr.mxu0 0.0
    %191 = vmatpush2.msra.mxu0 0.0
    %192 = vmatprep.subr.mxu0 0.0
    %193 = vmatpush2.msra.mxu0 0.0
    %194 = vmatprep.subr.mxu0 0.0
    %195 = vmatpush2.msra.mxu0 0.0
    %196 = vmatprep.subr.mxu0 0.0
    %197 = vmatpush2.msra.mxu0 0.0
    %198 = vmatprep.subr.mxu0 0.0
    %199 = vmatpush2.msra.mxu0 0.0
    %200 = vmatprep.subr.mxu0 0.0
    %201 = vmatpush2.msra.mxu0 0.0
    %202 = vmatprep.subr.mxu0 0.0
    %203 = vmatpush2.msra.mxu0 0.0
    %204 = vmatprep.subr.mxu0 0.0
    %205 = vmatpush2.msra.mxu0 0.0
    %206 = vmatprep.subr.mxu0 0.0
    %207 = vmatpush2.msra.mxu0 0.0
    %208 = vmatprep.subr.mxu0 0.0
    %209 = vmatpush2.msra.mxu0 0.0
    %210 = vmatprep.subr.mxu0 0.0
    %211 = vmatpush2.msra.mxu0 0.0
    %212 = vmatprep.subr.mxu0 0.0
    %213 = vmatpush2.msra.mxu0 0.0
    %214 = vmatprep.mubr.f32.mxu0 0.0
    %215 = vmatmul.mubr.f32.gmra.mxu0 %v139
    %v216 = vpop.f32.mrf.mxu0
    %v217 = vadd.f32 %v104, %v216
    %v218 = vpop.f32.mrf.mxu0
    %219 = vmatprep.mubr.f32.mxu0 0.0
    %220 = vmatmul.mubr.f32.gmra.mxu0 %v142
    %v221 = vpop.f32.mrf.mxu0
    %v222 = vadd.f32 %v104, %v221
    %v223 = vpop.f32.mrf.mxu0
    %224 = vmatprep.mubr.f32.mxu0 0.0
    %225 = vmatmul.mubr.f32.gmra.mxu0 %v145
    %v226 = vpop.f32.mrf.mxu0
    %v227 = vadd.f32 %v104, %v226
    %v228 = vpop.f32.mrf.mxu0
    %229 = vmatprep.mubr.f32.mxu0 0.0
    %230 = vmatmul.mubr.f32.gmra.mxu0 %v148
    %v231 = vpop.f32.mrf.mxu0
    %v232 = vadd.f32 %v104, %v231
    %v233 = vpop.f32.mrf.mxu0
    %234 = vdwg.mxu0
    %v235 = vmul.f32 %v217, 0.5
    %v236 = vmul.f32 %v222, 0.5
    %v237 = vmul.f32 %v227, 0.5
    %v238 = vmul.f32 %v232, 0.5
    %v239 = vmul.f32 %v217, 0.70710677
    %v240 = vmul.f32 %v222, 0.70710677
    %v241 = vmul.f32 %v227, 0.70710677
    %v242 = vmul.f32 %v232, 0.70710677
    %v243 = verf.f32.pop %v239
    %v244 = verf.f32.pop %v240
    %v245 = verf.f32.pop %v241
    %v246 = verf.f32.pop %v242
    %v247 = vadd.f32 %v243, 1.0
    %v248 = vadd.f32 %v244, 1.0
    %v249 = vadd.f32 %v245, 1.0
    %v250 = vadd.f32 %v246, 1.0
    %v251 = vmul.f32 %v235, %v247
    %v252 = vmul.f32 %v236, %v248
    %v253 = vmul.f32 %v237, %v249
    %v254 = vmul.f32 %v238, %v250
    %256 = vset.pattern.permute.xlu0 32
    %257 = vperm.xlu0 %256, %v58
    %v258 = vpop.permute.xlu0 %257
    %261 = vset.pattern.permute.xlu0 32
    %262 = vperm.xlu0 %261, %v59
    %v263 = vpop.permute.xlu0 %262
    %v265 = vsel %vm61, %v58, 0
    %v267 = vsel %vm61, %v59, 0
    %v270 = vsel %vm61, %v251, 0
    %v273 = vsel %vm61, %v252, 0
    %v276 = vsel %vm61, %v253, 0
    %v279 = vsel %vm61, %v254, 0
    %281 = vmatprep.subr.mxu0 0.0
    %282 = vmatpush1.xpose.msra.mxu0 0.0
    %283 = vmatprep.subr.mxu0 0.0
    %284 = vmatpush1.xpose.msra.mxu0 0.0
    %285 = vmatprep.subr.mxu0 0.0
    %286 = vmatpush1.xpose.msra.mxu0 0.0
    %287 = vmatprep.subr.mxu0 0.0
    %288 = vmatpush1.xpose.msra.mxu0 0.0
    %289 = vmatprep.subr.mxu0 0.0
    %290 = vmatpush1.xpose.msra.mxu0 0.0
    %291 = vmatprep.subr.mxu0 0.0
    %292 = vmatpush1.xpose.msra.mxu0 0.0
    %293 = vmatprep.subr.mxu0 0.0
    %294 = vmatpush1.xpose.msra.mxu0 0.0
    %295 = vmatprep.subr.mxu0 0.0
    %296 = vmatpush1.xpose.msra.mxu0 0.0
    %297 = vmatprep.subr.mxu0 0.0
    %298 = vmatpush1.xpose.msra.mxu0 0.0
    %299 = vmatprep.subr.mxu0 0.0
    %300 = vmatpush1.xpose.msra.mxu0 0.0
    %301 = vmatprep.subr.mxu0 0.0
    %302 = vmatpush1.xpose.msra.mxu0 0.0
    %303 = vmatprep.subr.mxu0 0.0
    %304 = vmatpush1.xpose.msra.mxu0 0.0
    %305 = vmatprep.subr.mxu0 0.0
    %306 = vmatpush1.xpose.msra.mxu0 %v279
    %307 = vmatprep.subr.mxu0 0.0
    %308 = vmatpush1.xpose.msra.mxu0 %v276
    %309 = vmatprep.subr.mxu0 0.0
    %310 = vmatpush1.xpose.msra.mxu0 %v273
    %311 = vmatprep.subr.mxu0 0.0
    %312 = vmatpush1.xpose.msra.mxu0 %v270
    %313 = vmatprep.subr.mxu0 0.0
    %314 = vmatpush2.xpose.msra.mxu0 0.0
    %315 = vmatprep.subr.mxu0 0.0
    %316 = vmatpush2.xpose.msra.mxu0 0.0
    %317 = vmatprep.subr.mxu0 0.0
    %318 = vmatpush2.xpose.msra.mxu0 0.0
    %319 = vmatprep.subr.mxu0 0.0
    %320 = vmatpush2.xpose.msra.mxu0 0.0
    %321 = vmatprep.subr.mxu0 0.0
    %322 = vmatpush2.xpose.msra.mxu0 0.0
    %323 = vmatprep.subr.mxu0 0.0
    %324 = vmatpush2.xpose.msra.mxu0 0.0
    %325 = vmatprep.subr.mxu0 0.0
    %326 = vmatpush2.xpose.msra.mxu0 0.0
    %327 = vmatprep.subr.mxu0 0.0
    %328 = vmatpush2.xpose.msra.mxu0 0.0
    %329 = vmatprep.subr.mxu0 0.0
    %330 = vmatpush2.xpose.msra.mxu0 0.0
    %331 = vmatprep.subr.mxu0 0.0
    %332 = vmatpush2.xpose.msra.mxu0 0.0
    %333 = vmatprep.subr.mxu0 0.0
    %334 = vmatpush2.xpose.msra.mxu0 0.0
    %335 = vmatprep.subr.mxu0 0.0
    %336 = vmatpush2.xpose.msra.mxu0 0.0
    %337 = vmatprep.subr.mxu0 0.0
    %338 = vmatpush2.xpose.msra.mxu0 0.0
    %339 = vmatprep.subr.mxu0 0.0
    %340 = vmatpush2.xpose.msra.mxu0 0.0
    %341 = vmatprep.subr.mxu0 0.0
    %342 = vmatpush2.xpose.msra.mxu0 0.0
    %343 = vmatprep.subr.mxu0 0.0
    %344 = vmatpush2.xpose.msra.mxu0 0.0
    %345 = vmatprep.mubr.f32.mxu0 0.0
    %346 = vmatmul.mubr.f32.gmra.mxu0 %v265
    %v347 = vpop.f32.mrf.mxu0
    %v348 = vadd.f32 %v258, %v347
    %v349 = vpop.f32.mrf.mxu0
    %350 = vmatprep.mubr.f32.mxu0 0.0
    %351 = vmatmul.mubr.f32.gmra.mxu0 %v267
    %v352 = vpop.f32.mrf.mxu0
    %v353 = vadd.f32 %v263, %v352
    %v354 = vpop.f32.mrf.mxu0
    %355 = vdwg.mxu0
    %v356 = vadd.f32 %v348, %v54
    %v357 = vadd.f32 %v353, %v55
    %358 = vst.msk [vmem:[#allocation8] sm:$0xff] %vm61, %v356
    %359 = vst.msk [vmem:[#allocation8 + $0x8] sm:$0xff] %vm61, %v357
    // Predicated region
    $region26: #{tpu_custom_call.1} parent=1 // pred_check
      _
    $region27: #{tpu_custom_call.1} parent=1 // pred_check_branch
      %361 = sbr.rel (0) target = $region29
    $region28: #{tpu_custom_call.1} parent=1 // pred_region
      %s363 = ssub.s32 256, 256
      %364 = vsyncadd [#allocation4], %s363
      %s365 = sshll.u32 [#allocation8], 4
      %s366 = int_to_ptr.vmem [resolvable:$true] %s365
      %371 = dma.vmem_to_hbm [thread:$0]  %s366, 256, %s3, [#allocation4], 128, 128, 8
    $region29: #{tpu_custom_call.1} parent=1 // pred_fallthru
      _
    // Predicated region
    $region30: #{tpu_custom_call.1} parent=1 // pred_check
      _
    $region31: #{tpu_custom_call.1} parent=1 // pred_check_branch
      %373 = sbr.rel (0) target = $region33
    $region32: #{tpu_custom_call.1} parent=1 // pred_region
      %374 = dma.done [#allocation4], 256
    $region33: #{tpu_custom_call.1} parent=1 // pred_fallthru
      _
    %375 = vsyncpa [#allocation3], 1
    %376 = vsyncpa [#allocation6], 1
    %377 = vsyncpa [#allocation4], 1

</llo_original>
